<compile_context>
chip_gen: v7x
topology: tpu7x:2x2x1
jax: 0.10.0
libtpu: 0.0.40
codegen_flags: <defaults>
</compile_context>

<pallas_src>
import functools
import math

import numpy as np
import jax
import jax.numpy as jnp
from jax import lax
from jax.experimental import pallas as pl
from jax.experimental.pallas import tpu as pltpu

_NEG_INF = -1e9
_WEIGHT_DTYPE = jnp.bfloat16      # MXU-native operand dtype; accumulation stays f32


# ----------------------------------------------------------------------------
# Small helpers
# ----------------------------------------------------------------------------

def _row_tile(m):
    """Largest row tile (multiple of 8) that divides M, or the whole M when small."""
    if m <= 512:
        return m
    for t in (512, 256, 128, 64, 32, 16, 8):
        if m % t == 0:
            return t
    return m


def _compiler_params(block_bytes, semantics):
    # Explicit VMEM budget with double-buffering headroom, capped below v7x's 64 MiB
    # physical VMEM so the same kernel compiles on v5e/v6e/v7x.
    vmem = int(min(48 << 20, max(16 << 20, 2 * block_bytes + (4 << 20))))
    return pltpu.CompilerParams(dimension_semantics=semantics, vmem_limit_bytes=vmem)


# ----------------------------------------------------------------------------
# Pallas kernels
# ----------------------------------------------------------------------------

def _linear_kernel(*refs, act, fuse_ln):
    """y = act( LN?(x) @ w + b ) on one (tm, K) row tile.  MXU in bf16, f32 accumulate."""
    if fuse_ln:
        x_ref, g_ref, bt_ref, w_ref, b_ref, o_ref = refs
    else:
        x_ref, w_ref, b_ref, o_ref = refs
    x = x_ref[...].astype(jnp.float32)
    if fuse_ln:                                       # LayerNorm prologue (f32 math)
        mu = jnp.mean(x, axis=-1, keepdims=True)
        xc = x - mu
        var = jnp.mean(xc * xc, axis=-1, keepdims=True)
        x = xc * lax.rsqrt(var + 1e-5) * g_ref[...] + bt_ref[...]
    y = jnp.dot(x.astype(w_ref.dtype), w_ref[...],
                preferred_element_type=jnp.float32) + b_ref[...]
    if act == "quickgelu":                            # CLIP QuickGELU: x * sigmoid(1.702 x)
        y = y * jax.nn.sigmoid(1.702 * y)
    elif act == "relu":
        y = jnp.maximum(y, 0.0)
    elif act == "sigmoid":
        y = jax.nn.sigmoid(y)
    o_ref[...] = y


def pallas_linear(x2d, w, b=None, *, act="none", ln=None):
    """Row-tiled linear: x:(M,K) f32, w:(K,N) bf16, b:(N,).  Optional fused LN prologue."""
    x2d = x2d.astype(jnp.float32)
    M, K = x2d.shape
    N = w.shape[1]
    if b is None:
        b = jnp.zeros((N,), jnp.float32)
    b2 = b.reshape(1, N).astype(jnp.float32)

    tm = _row_tile(M)
    grid = (M // tm,)
    inputs = [x2d]
    in_specs = [pl.BlockSpec((tm, K), lambda i: (i, 0))]
    if ln is not None:
        g, bt = ln
        inputs += [g.reshape(1, K).astype(jnp.float32),
                   bt.reshape(1, K).astype(jnp.float32)]
        in_specs += [pl.BlockSpec((1, K), lambda i: (0, 0)),
                     pl.BlockSpec((1, K), lambda i: (0, 0))]
    inputs += [w, b2]
    in_specs += [pl.BlockSpec((K, N), lambda i: (0, 0)),
                 pl.BlockSpec((1, N), lambda i: (0, 0))]

    blk_bytes = (tm * K * 4 + tm * N * 4 + K * N * w.dtype.itemsize + N * 4
                 + (2 * K * 4 if ln is not None else 0))
    return pl.pallas_call(
        functools.partial(_linear_kernel, act=act, fuse_ln=ln is not None),
        out_shape=jax.ShapeDtypeStruct((M, N), jnp.float32),
        grid=grid,
        in_specs=in_specs,
        out_specs=pl.BlockSpec((tm, N), lambda i: (i, 0)),
        compiler_params=_compiler_params(blk_bytes, ("parallel",)),
    )(*inputs)


def _ln_kernel(x_ref, g_ref, b_ref, o_ref):
    x = x_ref[...].astype(jnp.float32)
    mu = jnp.mean(x, axis=-1, keepdims=True)
    xc = x - mu
    var = jnp.mean(xc * xc, axis=-1, keepdims=True)
    o_ref[...] = xc * lax.rsqrt(var + 1e-5) * g_ref[...] + b_ref[...]


def pallas_layernorm(x2d, gamma, beta):
    """Standalone row-tiled LayerNorm (only used for ln_pre, which feeds no linear)."""
    x2d = x2d.astype(jnp.float32)
    M, E = x2d.shape
    tm = _row_tile(M)
    blk_bytes = 2 * tm * E * 4 + 2 * E * 4
    return pl.pallas_call(
        _ln_kernel,
        out_shape=jax.ShapeDtypeStruct((M, E), jnp.float32),
        grid=(M // tm,),
        in_specs=[pl.BlockSpec((tm, E), lambda i: (i, 0)),
                  pl.BlockSpec((1, E), lambda i: (0, 0)),
                  pl.BlockSpec((1, E), lambda i: (0, 0))],
        out_specs=pl.BlockSpec((tm, E), lambda i: (i, 0)),
        compiler_params=_compiler_params(blk_bytes, ("parallel",)),
    )(x2d, gamma.reshape(1, E).astype(jnp.float32),
      beta.reshape(1, E).astype(jnp.float32))


def _mha_kernel(*refs, n_head, has_mask, need_prob):
    """All heads of one batch element in a single grid step; tokens kept as (L, E)."""
    q_ref, k_ref, v_ref = refs[:3]
    pos = 3
    mask_ref = None
    if has_mask:
        mask_ref = refs[pos]
        pos += 1
    o_ref = refs[pos]
    pos += 1
    prob_ref = refs[pos] if need_prob else None

    q = q_ref[0].astype(jnp.float32)              # (Lq, E), Q already scaled by dh^-0.5
    k = k_ref[0].astype(jnp.float32)              # (Lk, E)
    v = v_ref[0].astype(jnp.float32)
    E = q.shape[-1]
    dh = E // n_head
    mask = mask_ref[0] if has_mask else None      # (1, Lk) additive bias (0 / -1e9)

    ctx_parts = []
    prob_sum = None
    for h in range(n_head):                       # heads split along the lane axis (unrolled)
        sl = slice(h * dh, (h + 1) * dh)
        s = lax.dot_general(q[:, sl].astype(jnp.bfloat16),
                            k[:, sl].astype(jnp.bfloat16),
                            (((1,), (1,)), ((), ())),
                            preferred_element_type=jnp.float32)       # (Lq, Lk)
        if has_mask:
            s = s + mask
        s = s - jnp.max(s, axis=-1, keepdims=True)
        e = jnp.exp(s)
        p = e * pl.reciprocal(jnp.sum(e, axis=-1, keepdims=True), approx=True)
        ctx_parts.append(jnp.dot(p.astype(jnp.bfloat16),
                                 v[:, sl].astype(jnp.bfloat16),
                                 preferred_element_type=jnp.float32))  # (Lq, dh)
        if need_prob:
            prob_sum = p if prob_sum is None else prob_sum + p

    o_ref[0] = jnp.concatenate(ctx_parts, axis=-1)                     # lane-dense (Lq, E)
    if need_prob:
        prob_ref[0] = prob_sum * (1.0 / n_head)   # torch average_attn_weights=True


def pallas_mha(q, k, v, n_head, mask_bias=None, need_prob=False):
    """Multi-head attention core on (B, L, E) tokens.  Grid over batch only (parallel)."""
    B, Lq, E = q.shape
    Lk = k.shape[1]
    inputs = [q.astype(jnp.float32), k.astype(jnp.float32), v.astype(jnp.float32)]
    in_specs = [pl.BlockSpec((1, Lq, E), lambda b: (b, 0, 0)),
                pl.BlockSpec((1, Lk, E), lambda b: (b, 0, 0)),
                pl.BlockSpec((1, Lk, E), lambda b: (b, 0, 0))]
    if mask_bias is not None:
        inputs.append(mask_bias.astype(jnp.float32))
        in_specs.append(pl.BlockSpec((1, 1, Lk), lambda b: (b, 0, 0)))

    kern = functools.partial(_mha_kernel, n_head=n_head,
                             has_mask=mask_bias is not None, need_prob=need_prob)
    blk_bytes = 4 * (2 * Lq * E + 2 * Lk * E + Lk + Lq * Lk)
    cp = _compiler_params(blk_bytes, ("parallel",))   # lets v7x shard batch over both TCs

    if need_prob:
        ctx, prob = pl.pallas_call(
            kern,
            out_shape=(jax.ShapeDtypeStruct((B, Lq, E), jnp.float32),
                       jax.ShapeDtypeStruct((B, Lq, Lk), jnp.float32)),
            grid=(B,), in_specs=in_specs,
            out_specs=(pl.BlockSpec((1, Lq, E), lambda b: (b, 0, 0)),
                       pl.BlockSpec((1, Lq, Lk), lambda b: (b, 0, 0))),
            compiler_params=cp,
        )(*inputs)
        return ctx, prob

    ctx = pl.pallas_call(
        kern,
        out_shape=jax.ShapeDtypeStruct((B, Lq, E), jnp.float32),
        grid=(B,), in_specs=in_specs,
        out_specs=pl.BlockSpec((1, Lq, E), lambda b: (b, 0, 0)),
        compiler_params=cp,
    )(*inputs)
    return ctx, None


# ----------------------------------------------------------------------------
# Transformer block (glue around the Pallas kernels; (B, tokens, E) layout throughout)
# ----------------------------------------------------------------------------

def resblock(lp, image, hoi, cross_bias, self_bias, n_head, need_prob):
    """HOIResidualAttentionBlock.forward (eval mode)."""
    B, S, E = image.shape
    L = hoi.shape[1]

    # ln_1(image) -> fused [cross-K | cross-V | self-Q*scale | self-K | self-V]
    img5 = pallas_linear(image.reshape(B * S, E), lp["w_img5"], lp["b_img5"],
                         ln=(lp["ln_1_w"], lp["ln_1_b"])).reshape(B, S, 5 * E)
    kc, vc = img5[..., :E], img5[..., E:2 * E]
    qs, ks, vs = img5[..., 2 * E:3 * E], img5[..., 3 * E:4 * E], img5[..., 4 * E:]

    # ln_1(hoi) -> cross-attention query (dh^-0.5 folded into the weight)
    qc = pallas_linear(hoi.reshape(B * L, E), lp["w_cross_q"], lp["b_cross_q"],
                       ln=(lp["ln_1_w"], lp["ln_1_b"])).reshape(B, L, E)

    # [HOI] x [CLS+PATCH] cross-attention
    ctx, attn_map = pallas_mha(qc, kc, vc, n_head, mask_bias=cross_bias, need_prob=need_prob)
    hoi = hoi + pallas_linear(ctx.reshape(B * L, E),
                              lp["w_cross_out"], lp["b_cross_out"]).reshape(B, L, E)
    # hoi MLP (ln_2 fused into c_fc, QuickGELU fused)
    h = pallas_linear(hoi.reshape(B * L, E), lp["w_cfc"], lp["b_cfc"],
                      ln=(lp["ln_2_w"], lp["ln_2_b"]), act="quickgelu")
    hoi = hoi + pallas_linear(h, lp["w_cproj"], lp["b_cproj"]).reshape(B, L, E)

    # [CLS+PATCH] self-attention (ln_1 of the pre-update image, as in the reference)
    ctx_i, _ = pallas_mha(qs, ks, vs, n_head, mask_bias=self_bias, need_prob=False)
    image = image + pallas_linear(ctx_i.reshape(B * S, E),
                                  lp["w_self_out"], lp["b_self_out"]).reshape(B, S, E)
    hi = pallas_linear(image.reshape(B * S, E), lp["w_cfc"], lp["b_cfc"],
                       ln=(lp["ln_2_w"], lp["ln_2_b"]), act="quickgelu")
    image = image + pallas_linear(hi, lp["w_cproj"], lp["b_cproj"]).reshape(B, S, E)

    # [HOI] x [CLS+HOI] sequential parsing (hoi_ln1 fused into the QKV projection)
    x = jnp.concatenate([image[:, 0:1], hoi], axis=1)            # (B, 1+L, E)
    Lx = L + 1
    qkv = pallas_linear(x.reshape(B * Lx, E), lp["w_parse_qkv"], lp["b_parse_qkv"],
                        ln=(lp["hoi_ln1_w"], lp["hoi_ln1_b"])).reshape(B, Lx, 3 * E)
    q_p, k_p, v_p = qkv[..., :E], qkv[..., E:2 * E], qkv[..., 2 * E:]
    ctx_p, _ = pallas_mha(q_p, k_p, v_p, n_head, mask_bias=None, need_prob=False)
    x = x + pallas_linear(ctx_p.reshape(B * Lx, E),
                          lp["w_parse_out"], lp["b_parse_out"]).reshape(B, Lx, E)
    hoi = x[:, 1:]
    return image, hoi, attn_map


# ----------------------------------------------------------------------------
# Positional-embedding bicubic interpolation (host-side numpy glue)
# ----------------------------------------------------------------------------

def _cubic_coeffs(t, A=-0.75):
    def w1(x):
        return ((A + 2.0) * x - (A + 3.0)) * x * x + 1.0

    def w2(x):
        return (((A * x) - 5.0 * A) * x + 8.0 * A) * x - 4.0 * A

    return np.array([w2(t + 1.0), w1(t), w1(1.0 - t), w2(2.0 - t)], dtype=np.float64)


def _torch_bicubic(grid, out_h, out_w, scale_h, scale_w):
    """torch upsample_bicubic2d, align_corners=False, explicit scale factors."""
    in_h, in_w, dim = grid.shape
    rh, rw = 1.0 / scale_h, 1.0 / scale_w
    g = grid.astype(np.float64)
    out = np.zeros((out_h, out_w, dim), dtype=np.float32)
    for oy in range(out_h):
        ry = rh * (oy + 0.5) - 0.5
        iy = int(math.floor(ry))
        cy = _cubic_coeffs(ry - iy)
        for ox in range(out_w):
            rx = rw * (ox + 0.5) - 0.5
            ix = int(math.floor(rx))
            cx = _cubic_coeffs(rx - ix)
            acc = np.zeros((dim,), dtype=np.float64)
            for j in range(4):
                yy = min(max(iy - 1 + j, 0), in_h - 1)
                for kk in range(4):
                    xx = min(max(ix - 1 + kk, 0), in_w - 1)
                    acc += cy[j] * cx[kk] * g[yy, xx]
            out[oy, ox] = acc
    return out


def interpolate_pos_embedding_np(pos_embed, mask, patch_size):
    pos_embed = np.asarray(pos_embed, dtype=np.float32)
    mask = np.asarray(mask, dtype=bool)
    inv = (~mask).astype(np.float32)
    ori_h = inv.cumsum(1)[:, -1, 0]
    ori_w = inv.cumsum(2)[:, 0, -1]
    ori_shapes = [(int(h), int(w)) for h, w in zip(ori_h, ori_w)]
    bs, h, w = mask.shape
    npatch = pos_embed.shape[0] - 1
    dim = pos_embed.shape[1]
    class_pos = pos_embed[0]
    patch_pos = pos_embed[1:]
    n = int(math.sqrt(npatch))
    h_full, w_full = h // patch_size, w // patch_size
    out = np.zeros((bs, h_full, w_full, dim), dtype=np.float32)
    grid = patch_pos.reshape(n, n, dim)
    for i, (hi, wi) in enumerate(ori_shapes):
        w0, h0 = wi // patch_size, hi // patch_size
        w0f, h0f = w0 + 0.1, h0 + 0.1
        scale_h = h0f / math.sqrt(npatch)
        scale_w = w0f / math.sqrt(npatch)
        out_h = int(math.floor(n * scale_h))
        out_w = int(math.floor(n * scale_w))
        interp = _torch_bicubic(grid, out_h, out_w, scale_h, scale_w)
        assert int(h0f) == out_h and int(w0f) == out_w
        out[i, :int(h0f), :int(w0f), :] = interp
    out = out.reshape(bs, -1, dim)
    out = np.concatenate([np.broadcast_to(class_pos, (bs, 1, dim)), out], axis=1)
    return out


# ----------------------------------------------------------------------------
# Full HOIVisionTransformer forward (enable_dec=False)
# ----------------------------------------------------------------------------

def hoi_vit_forward(kp, image_nchw, mask_np, cfg):
    B, C, H, W = image_nchw.shape
    psz, E, nh = cfg["patch_size"], cfg["width"], cfg["heads"]
    L, D = cfg["hoi_token_length"], cfg["output_dim"]
    Hp, Wp = H // psz, W // psz
    Np = Hp * Wp
    S = Np + 1

    # ---- host-side glue: bicubic pos-embed interpolation + mask pooling ----
    # TODO(synk): data-dependent bicubic interpolation reproduced on the host with numpy
    # (matches torch upsample_bicubic2d, align_corners=False); not a Pallas kernel.
    patch_pos_embed = jnp.asarray(interpolate_pos_embedding_np(
        np.asarray(kp["positional_embedding"], np.float32), mask_np, psz))

    mask_pool = mask_np.astype(np.float32).reshape(B, Hp, psz, Wp, psz).mean(axis=(2, 4)) > 0
    mask_flat = np.concatenate([np.ones((B, 1), bool), mask_pool.reshape(B, -1)], axis=1)
    image_mask = mask_flat.copy()
    image_mask[:, 0] = False
    # key-padding masks are tiny (B,1,S) additive biases -- the dense (B*heads, Lq, Lk)
    # bias tensor is never materialized.
    cross_bias = jnp.asarray(np.where(mask_flat, _NEG_INF, 0.0), jnp.float32).reshape(B, 1, S)
    self_bias = jnp.asarray(np.where(image_mask, _NEG_INF, 0.0), jnp.float32).reshape(B, 1, S)

    # ---- conv1 (stride == kernel == patch) as patchify + tiled matmul ----
    patches = image_nchw.reshape(B, C, Hp, psz, Wp, psz) \
                        .transpose(0, 2, 4, 1, 3, 5).reshape(B * Np, C * psz * psz)
    img_tok = pallas_linear(patches, kp["conv1_wt"]).reshape(B, Np, E)

    cls = jnp.broadcast_to(kp["class_embedding"][None, None, :], (B, 1, E))
    img_tok = jnp.concatenate([cls, img_tok], axis=1) + patch_pos_embed     # (B, S, E)
    hoi = jnp.broadcast_to((kp["hoi_token_embed"] + kp["hoi_pos_embed"])[None], (B, L, E))

    # single ln_pre pass over concatenated image + hoi tokens
    tokens = jnp.concatenate([img_tok, hoi], axis=1)
    tokens = pallas_layernorm(tokens.reshape(-1, E),
                              kp["ln_pre_w"], kp["ln_pre_b"]).reshape(B, S + L, E)
    image_t, hoi_t = tokens[:, :S], tokens[:, S:]

    attn_map = None
    n_layers = len(kp["layers"])
    for li, lp in enumerate(kp["layers"]):
        # softmax probs only materialized for the last layer (the only attn_map returned)
        image_t, hoi_t, am = resblock(lp, image_t, hoi_t, cross_bias, self_bias, nh,
                                      need_prob=(li == n_layers - 1))
        if am is not None:
            attn_map = am

    # ---- heads ----
    # ln_post fused into the output projection; CLS rows + hoi rows share a single call.
    post_rows = jnp.concatenate([image_t[:, 0, :], hoi_t.reshape(B * L, E)], axis=0)
    feats = pallas_linear(post_rows, kp["proj"], ln=(kp["ln_post_w"], kp["ln_post_b"]))
    image_features = feats[:B]
    hoi_features = feats[B:].reshape(B, L, D)

    # NOTE: my_person / my_action / my_object MLPs are skipped: their results are not part
    # of the return dict when enable_dec=False (dead compute in the reference forward).

    hoi2 = hoi_t.reshape(B * L, E)
    y0 = pallas_linear(hoi2, kp["w_box0"], kp["b_box0"])         # fused [bbox_score | bbox l0]
    box_scores = y0[:, :1].reshape(B, L, 1)
    h1 = jnp.maximum(y0[:, 1:], 0.0)
    h2 = pallas_linear(h1, kp["w_box1"], kp["b_box1"], act="relu")
    pred_boxes = pallas_linear(h2, kp["w_box2"], kp["b_box2"], act="sigmoid").reshape(B, L, 8)

    return {"image_features": image_features,
            "hoi_features": hoi_features,
            "pred_boxes": pred_boxes,
            "box_scores": box_scores,
            "attn_maps": attn_map}


# ----------------------------------------------------------------------------
# Parameter initialization (torch layout) and one-time preparation (kernel layout)
# ----------------------------------------------------------------------------

def init_params(key, cfg):
    E, D, psz, L = cfg["width"], cfg["output_dim"], cfg["patch_size"], cfg["hoi_token_length"]
    n_tok = (cfg["image_resolution"] // psz) ** 2 + 1
    scale = E ** -0.5
    keys = iter(jax.random.split(key, 128))

    def nrm(shape, s):
        return jax.random.normal(next(keys), shape, jnp.float32) * s

    def mha_p():
        return {"in_proj_weight": nrm((3 * E, E), scale),
                "in_proj_bias": nrm((3 * E,), 0.02),
                "out_proj_weight": nrm((E, E), scale),
                "out_proj_bias": jnp.zeros((E,), jnp.float32)}

    def ln_pair():
        return jnp.ones((E,), jnp.float32), jnp.zeros((E,), jnp.float32)

    layers = []
    for _ in range(cfg["layers"]):
        l1w, l1b = ln_pair()
        l2w, l2b = ln_pair()
        h1w, h1b = ln_pair()
        layers.append({
            "hoi_parse_attn": mha_p(), "hoi_cross_attn": mha_p(), "attn": mha_p(),
            "ln_1_w": l1w, "ln_1_b": l1b, "ln_2_w": l2w, "ln_2_b": l2b,
            "hoi_ln1_w": h1w, "hoi_ln1_b": h1b,
            "mlp": {"c_fc_w": nrm((4 * E, E), scale),
                    "c_fc_b": jnp.zeros((4 * E,), jnp.float32),
                    "c_proj_w": nrm((E, 4 * E), (4 * E) ** -0.5),
                    "c_proj_b": jnp.zeros((E,), jnp.float32)},
        })

    def mlp3_p(din, dh_, dout):
        return [(nrm((dh_, din), din ** -0.5), jnp.zeros((dh_,), jnp.float32)),
                (nrm((dh_, dh_), dh_ ** -0.5), jnp.zeros((dh_,), jnp.float32)),
                (nrm((dout, dh_), dh_ ** -0.5), jnp.zeros((dout,), jnp.float32))]

    return {
        "conv1_w": nrm((E, 3, psz, psz), (3 * psz * psz) ** -0.5),
        "class_embedding": nrm((E,), scale),
        "positional_embedding": nrm((n_tok, E), scale),
        "ln_pre_w": jnp.ones((E,), jnp.float32), "ln_pre_b": jnp.zeros((E,), jnp.float32),
        "ln_post_w": jnp.ones((E,), jnp.float32), "ln_post_b": jnp.zeros((E,), jnp.float32),
        "proj": nrm((E, D), scale),
        "hoi_token_embed": nrm((L, E), scale),
        "hoi_pos_embed": nrm((L, E), scale),
        "layers": layers,
        "bbox_score_w": nrm((1, E), scale), "bbox_score_b": jnp.zeros((1,), jnp.float32),
        "bbox_embed": mlp3_p(E, E, 8),
    }


def prepare_params(p, cfg):
    """Hoist all weight transposes / QKV fusions / scale folding / bf16 casts out of forward."""
    E, nh = cfg["width"], cfg["heads"]
    dh = E // nh
    scale = dh ** -0.5
    wdt, f32 = _WEIGHT_DTYPE, jnp.float32

    def t(w):
        return jnp.asarray(w, f32).T.astype(wdt)

    def split_qkv(m):
        W = jnp.asarray(m["in_proj_weight"], f32)
        bvec = jnp.asarray(m["in_proj_bias"], f32)
        return (W[:E], W[E:2 * E], W[2 * E:]), (bvec[:E], bvec[E:2 * E], bvec[2 * E:])

    layers = []
    for lp in p["layers"]:
        (Wq_c, Wk_c, Wv_c), (bq_c, bk_c, bv_c) = split_qkv(lp["hoi_cross_attn"])
        (Wq_s, Wk_s, Wv_s), (bq_s, bk_s, bv_s) = split_qkv(lp["attn"])
        (Wq_p, Wk_p, Wv_p), (bq_p, bk_p, bv_p) = split_qkv(lp["hoi_parse_attn"])
        layers.append({
            "w_cross_q": (Wq_c.T * scale).astype(wdt), "b_cross_q": bq_c * scale,
            "w_img5": jnp.concatenate(
                [Wk_c.T, Wv_c.T, Wq_s.T * scale, Wk_s.T, Wv_s.T], axis=1).astype(wdt),
            "b_img5": jnp.concatenate([bk_c, bv_c, bq_s * scale, bk_s, bv_s]),
            "w_cross_out": t(lp["hoi_cross_attn"]["out_proj_weight"]),
            "b_cross_out": jnp.asarray(lp["hoi_cross_attn"]["out_proj_bias"], f32),
            "w_self_out": t(lp["attn"]["out_proj_weight"]),
            "b_self_out": jnp.asarray(lp["attn"]["out_proj_bias"], f32),
            "w_parse_qkv": jnp.concatenate(
                [Wq_p.T * scale, Wk_p.T, Wv_p.T], axis=1).astype(wdt),
            "b_parse_qkv": jnp.concatenate([bq_p * scale, bk_p, bv_p]),
            "w_parse_out": t(lp["hoi_parse_attn"]["out_proj_weight"]),
            "b_parse_out": jnp.asarray(lp["hoi_parse_attn"]["out_proj_bias"], f32),
            "w_cfc": t(lp["mlp"]["c_fc_w"]), "b_cfc": jnp.asarray(lp["mlp"]["c_fc_b"], f32),
            "w_cproj": t(lp["mlp"]["c_proj_w"]), "b_cproj": jnp.asarray(lp["mlp"]["c_proj_b"], f32),
            "ln_1_w": lp["ln_1_w"], "ln_1_b": lp["ln_1_b"],
            "ln_2_w": lp["ln_2_w"], "ln_2_b": lp["ln_2_b"],
            "hoi_ln1_w": lp["hoi_ln1_w"], "hoi_ln1_b": lp["hoi_ln1_b"],
        })

    bb = p["bbox_embed"]
    return {
        "conv1_wt": jnp.asarray(p["conv1_w"], f32).reshape(E, -1).T.astype(wdt),
        "class_embedding": jnp.asarray(p["class_embedding"], f32),
        "positional_embedding": jnp.asarray(p["positional_embedding"], f32),
        "hoi_token_embed": jnp.asarray(p["hoi_token_embed"], f32),
        "hoi_pos_embed": jnp.asarray(p["hoi_pos_embed"], f32),
        "ln_pre_w": p["ln_pre_w"], "ln_pre_b": p["ln_pre_b"],
        "ln_post_w": p["ln_post_w"], "ln_post_b": p["ln_post_b"],
        "proj": jnp.asarray(p["proj"], f32).astype(wdt),
        "layers": layers,
        # bbox_score (N=1) fused with bbox_embed layer-0 (same input) into a wider matmul
        "w_box0": jnp.concatenate([jnp.asarray(p["bbox_score_w"], f32).T,
                                   jnp.asarray(bb[0][0], f32).T], axis=1).astype(wdt),
        "b_box0": jnp.concatenate([jnp.asarray(p["bbox_score_b"], f32),
                                   jnp.asarray(bb[0][1], f32)]),
        "w_box1": t(bb[1][0]), "b_box1": jnp.asarray(bb[1][1], f32),
        "w_box2": t(bb[2][0]), "b_box2": jnp.asarray(bb[2][1], f32),
    }


# ----------------------------------------------------------------------------
if __name__ == "__main__":
    cfg = dict(image_resolution=16, patch_size=8, width=32, layers=2, heads=4,
               output_dim=16, hoi_token_length=5)
    B = 2
    key = jax.random.PRNGKey(0)
    k_img, k_par = jax.random.split(key)

    image = jax.random.normal(
        k_img, (B, 3, cfg["image_resolution"], cfg["image_resolution"]), jnp.float32)
    # padding mask: sample 0 unpadded, sample 1 has its bottom half padded (True = pad)
    mask_np = np.zeros((B, cfg["image_resolution"], cfg["image_resolution"]), dtype=bool)
    mask_np[1, cfg["image_resolution"] // 2:, :] = True

    raw_params = init_params(k_par, cfg)
    params = prepare_params(raw_params, cfg)    # transposes/fusions/bf16 casts done once

    out = hoi_vit_forward(params, image, mask_np, cfg)
    out = jax.block_until_ready(out)

    S = (cfg["image_resolution"] // cfg["patch_size"]) ** 2 + 1
    L = cfg["hoi_token_length"]
    assert out["image_features"].shape == (B, cfg["output_dim"])
    assert out["hoi_features"].shape == (B, L, cfg["output_dim"])
    assert out["pred_boxes"].shape == (B, L, 8)
    assert out["box_scores"].shape == (B, L, 1)
    assert out["attn_maps"].shape == (B, L, S)
    for v in out.values():
        assert np.isfinite(np.asarray(v)).all()

    print("KERNEL_OK")
</pallas_src>

<mosaic_0001>
module attributes {stable_mosaic.version = 11 : i64} {
  func.func @_linear_kernel(%arg0: i32, %arg1: memref<8x192xf32, #tpu.memory_space<vmem>>, %arg2: memref<192x32xbf16, #tpu.memory_space<vmem>>, %arg3: memref<1x32xf32, #tpu.memory_space<vmem>>, %arg4: memref<8x32xf32, #tpu.memory_space<vmem>>) attributes {dimension_semantics = [#tpu.dimension_semantics<parallel>], iteration_bounds = array<i64: 1>, scalar_prefetch = 0 : i64, scratch_operands = 0 : i64, tpu.core_type = #tpu.core_type<tc>, window_params = [{transform_indices = @transform_0, window_bounds = array<i64: 8, 192>}, {pipeline_mode = #tpu.pipeline_mode<synchronous>, transform_indices = @transform_1, window_bounds = array<i64: 192, 32>}, {pipeline_mode = #tpu.pipeline_mode<synchronous>, transform_indices = @transform_2, window_bounds = array<i64: 1, 32>}, {transform_indices = @transform_3, window_bounds = array<i64: 8, 32>}]} {
    %c0 = arith.constant 0 : index
    %c0_0 = arith.constant 0 : index
    %0 = vector.load %arg1[%c0, %c0_0] : memref<8x192xf32, #tpu.memory_space<vmem>>, vector<8x192xf32>
    %1 = arith.truncf %0 : vector<8x192xf32> to vector<8x192xbf16>
    %c0_1 = arith.constant 0 : index
    %c0_2 = arith.constant 0 : index
    %2 = vector.load %arg2[%c0_1, %c0_2] : memref<192x32xbf16, #tpu.memory_space<vmem>>, vector<192x32xbf16>
    %cst = arith.constant dense<0.000000e+00> : vector<8x32xf32>
    %3 = tpu.matmul %1, %2, %cst {dimension_numbers = #tpu.dot_dimension_numbers<[1], [0], [0], [1], [0, 0, 1, 1], [], []>} : vector<8x192xbf16>, vector<192x32xbf16>, vector<8x32xf32> -> vector<8x32xf32>
    %c0_3 = arith.constant 0 : index
    %c0_4 = arith.constant 0 : index
    %4 = vector.load %arg3[%c0_3, %c0_4] : memref<1x32xf32, #tpu.memory_space<vmem>>, vector<1x32xf32>
    %5 = vector.broadcast %4 : vector<1x32xf32> to vector<8x32xf32>
    %6 = arith.addf %3, %5 : vector<8x32xf32>
    %c0_5 = arith.constant 0 : index
    %c0_6 = arith.constant 0 : index
    %7 = vector.load %arg4[%c0_5, %c0_6] : memref<8x32xf32, #tpu.memory_space<vmem>>, vector<8x32xf32>
    tpu.vector_store %arg4[%c0_5, %c0_6], %6 {strides = array<i32>} : memref<8x32xf32, #tpu.memory_space<vmem>>, vector<8x32xf32>,
    return
  }
  func.func @transform_0(%arg0: i32) -> (i32, i32) {
    %c0_i32 = arith.constant 0 : i32
    %c0_i32_0 = arith.constant 0 : i32
    return %arg0, %c0_i32 : i32, i32
  }
  func.func @transform_1(%arg0: i32) -> (i32, i32) {
    %c0_i32 = arith.constant 0 : i32
    %c0_i32_0 = arith.constant 0 : i32
    %c0_i32_1 = arith.constant 0 : i32
    return %c0_i32, %c0_i32_0 : i32, i32
  }
  func.func @transform_2(%arg0: i32) -> (i32, i32) {
    %c0_i32 = arith.constant 0 : i32
    %c0_i32_0 = arith.constant 0 : i32
    %c0_i32_1 = arith.constant 0 : i32
    return %c0_i32, %c0_i32_0 : i32, i32
  }
  func.func @transform_3(%arg0: i32) -> (i32, i32) {
    %c0_i32 = arith.constant 0 : i32
    %c0_i32_0 = arith.constant 0 : i32
    return %arg0, %c0_i32 : i32, i32
  }
}

</mosaic_0001>

<llo_original>
// kernel: tpu_custom_call.1
$region0: #{tpu_custom_call.1}
  #allocation0 [shape = 'u32[]', space=smem, size = 0x4, offset = 0x4, fixed_abs, tag = 'smem constant byte address 0x4 - core index']
  #allocation1 [shape = 'u32[144,128]{1,0:T(1,128)}', space=vmem, size = 0x12000, scoped, tag = 'internal scratch']
  %s0 = inlined_call_operand.vmem [shape: f32[8,192], index: 0, kind: input, shape index: {}]
  %s1 = inlined_call_operand.vmem [shape: bf16[192,32], index: 1, kind: input, shape index: {}]
  %s2 = inlined_call_operand.vmem [shape: f32[1,32], index: 2, kind: input, shape index: {}]
  %s3 = inlined_call_operand.hbm [shape: f32[8,32], index: 3, kind: output, shape index: {}]
  %s4 = sld [smem:[#allocation0]]
  $region22: #{tpu_custom_call.1} parent=0
    _
  %s6 = ssub.s32 1, %s4
  %s7 = scalar_select 0, %s6, %s4
  $region1: #{tpu_custom_call.1} parent=0
    #allocation2 [shape = 'u8[4096]{0}', space=vmem, size = 0x1000, scoped, tag = 'output window, operand 0, single buffered']
    #allocation3 [shape = 's32[1]{0}', space=sflag, size = 0x4, scoped, tag = 'scoped memory for tpu_custom_call.1']
    %8 = vsyncpa [#allocation3], 0
    // Predicated region
    $region2: #{tpu_custom_call.1} parent=1 // pred_check
      _
    $region3: #{tpu_custom_call.1} parent=1 // pred_check_branch
      %10 = sbr.rel (0) target = $region5
    $region4: #{tpu_custom_call.1} parent=1 // pred_region
      _
    $region5: #{tpu_custom_call.1} parent=1 // pred_fallthru
      _
    // Predicated region
    $region6: #{tpu_custom_call.1} parent=1 // pred_check
      _
    $region7: #{tpu_custom_call.1} parent=1 // pred_check_branch
      %12 = sbr.rel (0) target = $region9
    $region8: #{tpu_custom_call.1} parent=1 // pred_region
      _
    $region9: #{tpu_custom_call.1} parent=1 // pred_fallthru
      _
    // Predicated region
    $region10: #{tpu_custom_call.1} parent=1 // pred_check
      _
    $region11: #{tpu_custom_call.1} parent=1 // pred_check_branch
      %14 = sbr.rel (0) target = $region13
    $region12: #{tpu_custom_call.1} parent=1 // pred_region
      _
    $region13: #{tpu_custom_call.1} parent=1 // pred_fallthru
      _
    %v16 = vld [vmem:[%s0] sm:$0xff]
    %v17 = vld [vmem:[%s0 + $0x8] sm:$0xff]
    %v18 = vpack.c.bf16 %v16, %v16
    %v19 = vpack.c.bf16 %v17, %v17
    %v20 = vld [vmem:[%s1] sm:$0xf]
    %v21 = vld [vmem:[%s1 + $0x4] sm:$0xf]
    %v22 = vld [vmem:[%s1 + $0x8] sm:$0xf]
    %v23 = vld [vmem:[%s1 + $0xc] sm:$0xf]
    %v24 = vld [vmem:[%s1 + $0x10] sm:$0xf]
    %v25 = vld [vmem:[%s1 + $0x14] sm:$0xf]
    %v26 = vld [vmem:[%s1 + $0x18] sm:$0xf]
    %v27 = vld [vmem:[%s1 + $0x1c] sm:$0xf]
    %v28 = vld [vmem:[%s1 + $0x20] sm:$0xf]
    %v29 = vld [vmem:[%s1 + $0x24] sm:$0xf]
    %v30 = vld [vmem:[%s1 + $0x28] sm:$0xf]
    %v31 = vld [vmem:[%s1 + $0x2c] sm:$0xf]
    %v32 = vld [vmem:[%s1 + $0x30] sm:$0xf]
    %v33 = vld [vmem:[%s1 + $0x34] sm:$0xf]
    %v34 = vld [vmem:[%s1 + $0x38] sm:$0xf]
    %v35 = vld [vmem:[%s1 + $0x3c] sm:$0xf]
    %v36 = vld [vmem:[%s1 + $0x40] sm:$0xf]
    %v37 = vld [vmem:[%s1 + $0x44] sm:$0xf]
    %v38 = vld [vmem:[%s1 + $0x48] sm:$0xf]
    %v39 = vld [vmem:[%s1 + $0x4c] sm:$0xf]
    %v40 = vld [vmem:[%s1 + $0x50] sm:$0xf]
    %v41 = vld [vmem:[%s1 + $0x54] sm:$0xf]
    %v42 = vld [vmem:[%s1 + $0x58] sm:$0xf]
    %v43 = vld [vmem:[%s1 + $0x5c] sm:$0xf]
    %v44 = vld [vmem:[%s2] sm:$0x1]
    %v46 = vlaneseq
    %v47 = vshrl.u32 %v46, 7
    %v48 = vsub.s32 0, %v47
    %v49 = vrot.slane %v44, %v48
    %v75 = vunpack.c.l.b16 %v20
    %v76 = vunpack.c.l.b16 %v21
    %v77 = vunpack.c.l.b16 %v22
    %v78 = vunpack.c.l.b16 %v23
    %v79 = vunpack.c.l.b16 %v24
    %v80 = vunpack.c.l.b16 %v25
    %v81 = vunpack.c.l.b16 %v26
    %v82 = vunpack.c.l.b16 %v27
    %v83 = vunpack.c.l.b16 %v28
    %v84 = vunpack.c.l.b16 %v29
    %v85 = vunpack.c.l.b16 %v30
    %v86 = vunpack.c.l.b16 %v31
    %v87 = vunpack.c.l.b16 %v32
    %v88 = vunpack.c.l.b16 %v33
    %v89 = vunpack.c.l.b16 %v34
    %v90 = vunpack.c.l.b16 %v35
    %v91 = vunpack.c.l.b16 %v36
    %v92 = vunpack.c.l.b16 %v37
    %v93 = vunpack.c.l.b16 %v38
    %v94 = vunpack.c.l.b16 %v39
    %v95 = vunpack.c.l.b16 %v40
    %v96 = vunpack.c.l.b16 %v41
    %v97 = vunpack.c.l.b16 %v42
    %v98 = vunpack.c.l.b16 %v43
    %v99 = vpack.c.b16 %v76, %v75
    %v100 = vpack.c.b16 %v78, %v77
    %v101 = vpack.c.b16 %v80, %v79
    %v102 = vpack.c.b16 %v82, %v81
    %v103 = vpack.c.b16 %v84, %v83
    %v104 = vpack.c.b16 %v86, %v85
    %v105 = vpack.c.b16 %v88, %v87
    %v106 = vpack.c.b16 %v90, %v89
    %v107 = vpack.c.b16 %v92, %v91
    %v108 = vpack.c.b16 %v94, %v93
    %v109 = vpack.c.b16 %v96, %v95
    %v110 = vpack.c.b16 %v98, %v97
    %vm123 = vcmask 523264
    %v125 = vsel %vm123, %v19, 0
    %127 = vmatprep.subr.bf16.mxu0 0
    %128 = vmatpush1.bf16.msra.mxu0 %v99
    %129 = vmatprep.subr.bf16.mxu0 0
    %130 = vmatpush1.bf16.msra.mxu0 %v100
    %131 = vmatprep.subr.bf16.mxu0 0
    %132 = vmatpush1.bf16.msra.mxu0 %v101
    %133 = vmatprep.subr.bf16.mxu0 0
    %134 = vmatpush1.bf16.msra.mxu0 %v102
    %135 = vmatprep.subr.bf16.mxu0 0
    %136 = vmatpush1.bf16.msra.mxu0 %v103
    %137 = vmatprep.subr.bf16.mxu0 0
    %138 = vmatpush1.bf16.msra.mxu0 %v104
    %139 = vmatprep.subr.bf16.mxu0 0
    %140 = vmatpush1.bf16.msra.mxu0 %v105
    %141 = vmatprep.subr.bf16.mxu0 0
    %142 = vmatpush1.bf16.msra.mxu0 %v106
    %143 = vmatprep.subr.bf16.mxu0 0
    %144 = vmatpush1.bf16.msra.mxu0 %v107
    %145 = vmatprep.subr.bf16.mxu0 0
    %146 = vmatpush1.bf16.msra.mxu0 %v108
    %147 = vmatprep.subr.bf16.mxu0 0
    %148 = vmatpush1.bf16.msra.mxu0 %v109
    %149 = vmatprep.subr.bf16.mxu0 0
    %150 = vmatpush1.bf16.msra.mxu0 %v110
    %151 = vmatprep.subr.bf16.mxu0 0
    %152 = vmatpush1.bf16.msra.mxu0 0
    %153 = vmatprep.subr.bf16.mxu0 0
    %154 = vmatpush1.bf16.msra.mxu0 0
    %155 = vmatprep.subr.bf16.mxu0 0
    %156 = vmatpush1.bf16.msra.mxu0 0
    %157 = vmatprep.subr.bf16.mxu0 0
    %158 = vmatpush1.bf16.msra.mxu0 0
    %159 = vmatprep.mubr.bf16.mxu0 %v125
    %160 = vmatmul.mubr.bf16.gmra.mrb[0].mxu0 %v18
    %v161 = vpop.f32.mrb[0].mxu0
    %v162 = vadd.f32 %v49, %v161
    %v163 = vpop.f32.mrb[0].mxu0
    %v164 = vpop.f32.mrb[0].mxu0
    %v165 = vpop.f32.mrb[0].mxu0
    %166 = vdwg.mxu0
    %vm167 = vcmask 261120
    %168 = vst.msk [vmem:[#allocation2] sm:$0xff] %vm167, %v162
    // Predicated region
    $region14: #{tpu_custom_call.1} parent=1 // pred_check
      _
    $region15: #{tpu_custom_call.1} parent=1 // pred_check_branch
      %170 = sbr.rel (0) target = $region17
    $region16: #{tpu_custom_call.1} parent=1 // pred_region
      %s172 = ssub.s32 128, 128
      %173 = vsyncadd [#allocation3], %s172
      %s175 = sshll.u32 [#allocation2], 4
      %s176 = int_to_ptr.vmem [resolvable:$true] %s175
      %178 = dma.vmem_to_hbm [thread:$0]  %s176, 128, %s3, [#allocation3]
    $region17: #{tpu_custom_call.1} parent=1 // pred_fallthru
      _
    // Predicated region
    $region18: #{tpu_custom_call.1} parent=1 // pred_check
      _
    $region19: #{tpu_custom_call.1} parent=1 // pred_check_branch
      %180 = sbr.rel (0) target = $region21
    $region20: #{tpu_custom_call.1} parent=1 // pred_region
      %181 = dma.done [#allocation3], 128
    $region21: #{tpu_custom_call.1} parent=1 // pred_fallthru
      _
    %182 = vsyncpa [#allocation3], 1

</llo_original>
